<compile_context>
chip_gen: v7x
topology: tpu7x:2x2x1
jax: 0.10.0
libtpu: 0.0.40
codegen_flags: <defaults>
</compile_context>

<pallas_src>
import functools

import jax
import jax.numpy as jnp
from jax.experimental import pallas as pl
from jax.experimental.pallas import tpu as pltpu


def _fused_packed_kernel(p_ref, w01_ref, b01_ref, w2_ref, b2_ref, o_ref):
    # folded conv+fc1+patchify: (tm, 256) @ (256, Wp*ff), f32 accumulate/bias
    h = jnp.dot(p_ref[...], w01_ref[...],
                preferred_element_type=jnp.float32) + b01_ref[...]
    h = jnp.maximum(h, 0.0)          # ReLU in f32 (VPU-native on all gens)
    h = h.astype(w2_ref.dtype)       # match fc2 MXU input dtype (no-op for f32)
    # block-diagonal fc2: (tm, Wp*ff) @ (Wp*ff, Wp*out)
    y = jnp.dot(h, w2_ref[...],
                preferred_element_type=jnp.float32) + b2_ref[...]
    o_ref[...] = y.astype(o_ref.dtype)


def _choose_tile(n, tm_max):
    """Row-tile (packed band rows), multiple of 16, even/balanced grid."""
    if n <= 512:
        return max(16, -(-n // 16) * 16)              # single tile, mult of 16
    steps = 2 * pl.cdiv(n, 2 * tm_max)                # even # of steps (v7x)
    tm = -(-pl.cdiv(n, steps) // 512) * 512           # round up to mult of 512
    return min(tm_max, tm)


def _fused_packed_mlp(bands, w01, b01, w2, b2, *, tm_max=2048,
                      out_dtype=jnp.float32):
    """bands: (N, Dp).  Returns (N, Wp*out_dim) in out_dtype."""
    n, dp = bands.shape
    dff = w01.shape[1]
    dout = w2.shape[1]

    tm = _choose_tile(n, tm_max)
    if n < tm:
        # tiny inputs only: pad up to a single tile.  For n >= tm we rely on
        # Pallas partial-block handling (garbage rows in the last input block
        # only feed garbage rows whose out-of-bounds stores are discarded;
        # valid because all ops here are row-independent).
        bands = jnp.pad(bands, ((0, tm - n), (0, 0)))
    n_rows = max(n, tm)
    grid = (pl.cdiv(n_rows, tm),)

    out = pl.pallas_call(
        _fused_packed_kernel,
        out_shape=jax.ShapeDtypeStruct((n_rows, dout), out_dtype),
        grid_spec=pltpu.PrefetchScalarGridSpec(
            num_scalar_prefetch=0,
            grid=grid,
            in_specs=[
                pl.BlockSpec((tm, dp), lambda i: (i, 0)),     # band rows tile
                # constant index_maps -> weights/biases stay VMEM-resident
                pl.BlockSpec((dp, dff), lambda i: (0, 0)),    # folded block weight
                pl.BlockSpec((1, dff), lambda i: (0, 0)),     # folded bias (f32)
                pl.BlockSpec((dff, dout), lambda i: (0, 0)),  # block-diag fc2
                pl.BlockSpec((1, dout), lambda i: (0, 0)),    # fc2 bias (f32)
            ],
            out_specs=pl.BlockSpec((tm, dout), lambda i: (i, 0)),
        ),
        compiler_params=pltpu.CompilerParams(
            dimension_semantics=("parallel",)),
    )(bands, w01, b01, w2, b2)
    return out[:n]


def single_conv_neural_net(x, params, *, K=4, S=4,
                           compute_dtype=jnp.float32,
                           out_dtype=jnp.float32,
                           tm_max=2048):
    """x: (B, T, H, W, Q) f32 -> (B, T, H', W', out_dim)."""
    assert K == S, "conv lowered as non-overlapping patch matmul (K == S)"
    B, T, H, W, Q = x.shape
    hidden = params["wc"].shape[1]
    ff = params["w1"].shape[1]
    out_dim = params["w2"].shape[1]
    Hp = (H - K) // S + 1
    Wp = (W - K) // S + 1
    Wq = Wp * K

    # ---- band view of x: contiguous reshape only (no permute, no extra HBM pass)
    xc = x[:, :, :Hp * K, :Wq, :]                     # no-op when K | H, K | W
    bands = xc.reshape(B * T * Hp, K * Wq * Q)        # band j = kh*Wq*Q + w*Q + q

    # ---- fold conv + fc1 + per-band patch layout into one block-structured weight
    # stored wc rows are torch's (q, kh, kw) order
    wc_r = params["wc"].reshape(Q, K, K, hidden)                   # (q, kh, kw, h)
    w01 = jnp.einsum('qabh,hf->abqf', wc_r, params["w1"])          # (kh, kw, q, ff)
    b01 = params["bc"] @ params["w1"] + params["b1"]               # (1, ff)
    eye = jnp.eye(Wp, dtype=jnp.float32)
    # row index (kh, wp, kw, q) == band element index; col index (wp, f)
    w01_big = jnp.einsum('abqf,wv->awbqvf', w01, eye).reshape(K * Wq * Q, Wp * ff)
    # block-diagonal fc2: row (wp, f), col (wp, o)
    w2_big = jnp.einsum('fo,wv->wfvo', params["w2"], eye).reshape(Wp * ff, Wp * out_dim)
    b01_big = jnp.tile(b01, (1, Wp))                               # (1, Wp*ff)
    b2_big = jnp.tile(params["b2"], (1, Wp))                       # (1, Wp*out)

    if compute_dtype != jnp.float32:
        # reduced-precision HBM path (valid on v5e/v6e/v7x: MXU is bf16-native;
        # biases, accumulation and ReLU stay f32 inside the kernel).
        bands = bands.astype(compute_dtype)
        w01_big = w01_big.astype(compute_dtype)
        w2_big = w2_big.astype(compute_dtype)

    out = _fused_packed_mlp(bands, w01_big, b01_big, w2_big, b2_big,
                            tm_max=tm_max, out_dtype=out_dtype)
    return out.reshape(B, T, Hp, Wp, out_dim)


def init_params(key, dim, hidden_dim=32, out_dim=32, hidden_ff=64, K=4):
    """Deterministic synthetic parameters (shapes match the torch module)."""
    ks = jax.random.split(key, 6)
    # conv weight (hidden_dim, dim, K, K) flattened to (dim*K*K, hidden_dim),
    # rows in torch's (C_in, kH, kW) order.
    wc = jax.random.normal(ks[0], (hidden_dim, dim, K, K), jnp.float32) * 0.05
    wc = wc.reshape(hidden_dim, dim * K * K).T
    bc = jax.random.normal(ks[1], (1, hidden_dim), jnp.float32) * 0.05
    # fc1: torch Linear weight (hidden_ff, hidden_dim) -> store transposed
    w1 = jax.random.normal(ks[2], (hidden_ff, hidden_dim), jnp.float32).T * 0.05
    b1 = jax.random.normal(ks[3], (1, hidden_ff), jnp.float32) * 0.05
    # fc2: (out_dim, hidden_ff) -> transposed
    w2 = jax.random.normal(ks[4], (out_dim, hidden_ff), jnp.float32).T * 0.05
    b2 = jax.random.normal(ks[5], (1, out_dim), jnp.float32) * 0.05
    return {"wc": wc, "bc": bc, "w1": w1, "b1": b1, "w2": w2, "b2": b2}


def _reference(x, params, *, K=4, S=4):
    """Pure-JAX reference using a real conv (un-folded weights) for validation."""
    B, T, H, W, Q = x.shape
    hidden = params["wc"].shape[1]
    x_nchw = jnp.transpose(x, (0, 1, 4, 2, 3)).reshape(B * T, Q, H, W)
    wconv = params["wc"].T.reshape(hidden, Q, K, K)              # (O, I, kH, kW)
    y = jax.lax.conv_general_dilated(
        x_nchw, wconv, window_strides=(S, S), padding="VALID",
        dimension_numbers=("NCHW", "OIHW", "NCHW"))
    y = y + params["bc"].reshape(1, hidden, 1, 1)
    y = jnp.transpose(y, (0, 2, 3, 1))                           # (BT, H', W', hidden)
    y = jnp.maximum(y @ params["w1"] + params["b1"], 0.0)
    y = y @ params["w2"] + params["b2"]
    BT, Hp, Wp, C = y.shape
    return y.reshape(B, T, Hp, Wp, C)


if __name__ == "__main__":
    key = jax.random.PRNGKey(0)
    kx, kp, kx2 = jax.random.split(key, 3)

    # ---- small test (shapes the module implies) ----
    B, T, H, W, Q = 2, 3, 16, 16, 4
    x = jax.random.normal(kx, (B, T, H, W, Q), jnp.float32)
    params = init_params(kp, dim=Q)
    ref = _reference(x, params, K=4, S=4)

    fwd = jax.jit(functools.partial(single_conv_neural_net, K=4, S=4))
    out = jax.block_until_ready(fwd(x, params))
    assert out.shape == (B, T, H // 4, W // 4, 32), out.shape
    assert jnp.allclose(out, ref, atol=1e-4, rtol=1e-4), "f32 mismatch vs reference"

    # ---- bf16 activation/weight path (halves input HBM traffic; f32 accumulate) ----
    fwd_bf16 = jax.jit(functools.partial(
        single_conv_neural_net, K=4, S=4, compute_dtype=jnp.bfloat16))
    out_bf16 = jax.block_until_ready(fwd_bf16(x, params))
    assert out_bf16.shape == out.shape
    assert jnp.allclose(out_bf16, ref, atol=3e-2, rtol=3e-2), "bf16 mismatch vs reference"

    # ---- medium test: exercises multi-step grid + partial last block ----
    B2, T2, H2, W2 = 3, 9, 96, 96        # -> 648 band rows > one 512-row tile
    x2 = jax.random.normal(kx2, (B2, T2, H2, W2, Q), jnp.float32)
    ref2 = _reference(x2, params, K=4, S=4)
    out2 = jax.block_until_ready(fwd(x2, params))
    assert out2.shape == ref2.shape, (out2.shape, ref2.shape)
    assert jnp.allclose(out2, ref2, atol=1e-4, rtol=1e-4), "f32 mismatch (multi-tile)"

    print("KERNEL_OK")
</pallas_src>

<mosaic_0001>
module attributes {stable_mosaic.version = 11 : i64} {
  func.func @_fused_packed_kernel(%arg0: i32, %arg1: memref<32x256xf32, #tpu.memory_space<vmem>>, %arg2: memref<256x256xf32, #tpu.memory_space<vmem>>, %arg3: memref<1x256xf32, #tpu.memory_space<vmem>>, %arg4: memref<256x128xf32, #tpu.memory_space<vmem>>, %arg5: memref<1x128xf32, #tpu.memory_space<vmem>>, %arg6: memref<32x128xf32, #tpu.memory_space<vmem>>) attributes {dimension_semantics = [#tpu.dimension_semantics<parallel>], iteration_bounds = array<i64: 1>, scalar_prefetch = 0 : i64, scratch_operands = 0 : i64, tpu.core_type = #tpu.core_type<tc>, window_params = [{transform_indices = @transform_0, window_bounds = array<i64: 32, 256>}, {pipeline_mode = #tpu.pipeline_mode<synchronous>, transform_indices = @transform_1, window_bounds = array<i64: 256, 256>}, {pipeline_mode = #tpu.pipeline_mode<synchronous>, transform_indices = @transform_2, window_bounds = array<i64: 1, 256>}, {pipeline_mode = #tpu.pipeline_mode<synchronous>, transform_indices = @transform_3, window_bounds = array<i64: 256, 128>}, {pipeline_mode = #tpu.pipeline_mode<synchronous>, transform_indices = @transform_4, window_bounds = array<i64: 1, 128>}, {transform_indices = @transform_5, window_bounds = array<i64: 32, 128>}]} {
    %c0 = arith.constant 0 : index
    %c0_0 = arith.constant 0 : index
    %0 = vector.load %arg1[%c0, %c0_0] : memref<32x256xf32, #tpu.memory_space<vmem>>, vector<32x256xf32>
    %c0_1 = arith.constant 0 : index
    %c0_2 = arith.constant 0 : index
    %1 = vector.load %arg2[%c0_1, %c0_2] : memref<256x256xf32, #tpu.memory_space<vmem>>, vector<256x256xf32>
    %cst = arith.constant dense<0.000000e+00> : vector<32x256xf32>
    %2 = tpu.matmul %0, %1, %cst {dimension_numbers = #tpu.dot_dimension_numbers<[1], [0], [0], [1], [0, 0, 1, 1], [], []>} : vector<32x256xf32>, vector<256x256xf32>, vector<32x256xf32> -> vector<32x256xf32>
    %c0_3 = arith.constant 0 : index
    %c0_4 = arith.constant 0 : index
    %3 = vector.load %arg3[%c0_3, %c0_4] : memref<1x256xf32, #tpu.memory_space<vmem>>, vector<1x256xf32>
    %4 = vector.broadcast %3 : vector<1x256xf32> to vector<32x256xf32>
    %5 = arith.addf %2, %4 : vector<32x256xf32>
    %cst_5 = arith.constant 0.000000e+00 : f32
    %6 = vector.broadcast %cst_5 : f32 to vector<32x256xf32>
    %7 = arith.maximumf %5, %6 : vector<32x256xf32>
    %c0_6 = arith.constant 0 : index
    %c0_7 = arith.constant 0 : index
    %8 = vector.load %arg4[%c0_6, %c0_7] : memref<256x128xf32, #tpu.memory_space<vmem>>, vector<256x128xf32>
    %cst_8 = arith.constant dense<0.000000e+00> : vector<32x128xf32>
    %9 = tpu.matmul %7, %8, %cst_8 {dimension_numbers = #tpu.dot_dimension_numbers<[1], [0], [0], [1], [0, 0, 1, 1], [], []>} : vector<32x256xf32>, vector<256x128xf32>, vector<32x128xf32> -> vector<32x128xf32>
    %c0_9 = arith.constant 0 : index
    %c0_10 = arith.constant 0 : index
    %10 = vector.load %arg5[%c0_9, %c0_10] : memref<1x128xf32, #tpu.memory_space<vmem>>, vector<1x128xf32>
    %11 = vector.broadcast %10 : vector<1x128xf32> to vector<32x128xf32>
    %12 = arith.addf %9, %11 : vector<32x128xf32>
    %c0_11 = arith.constant 0 : index
    %c0_12 = arith.constant 0 : index
    %13 = vector.load %arg6[%c0_11, %c0_12] : memref<32x128xf32, #tpu.memory_space<vmem>>, vector<32x128xf32>
    tpu.vector_store %arg6[%c0_11, %c0_12], %12 {strides = array<i32>} : memref<32x128xf32, #tpu.memory_space<vmem>>, vector<32x128xf32>,
    return
  }
  func.func @transform_0(%arg0: i32) -> (i32, i32) {
    %c0_i32 = arith.constant 0 : i32
    %c0_i32_0 = arith.constant 0 : i32
    return %arg0, %c0_i32 : i32, i32
  }
  func.func @transform_1(%arg0: i32) -> (i32, i32) {
    %c0_i32 = arith.constant 0 : i32
    %c0_i32_0 = arith.constant 0 : i32
    %c0_i32_1 = arith.constant 0 : i32
    return %c0_i32, %c0_i32_0 : i32, i32
  }
  func.func @transform_2(%arg0: i32) -> (i32, i32) {
    %c0_i32 = arith.constant 0 : i32
    %c0_i32_0 = arith.constant 0 : i32
    %c0_i32_1 = arith.constant 0 : i32
    return %c0_i32, %c0_i32_0 : i32, i32
  }
  func.func @transform_3(%arg0: i32) -> (i32, i32) {
    %c0_i32 = arith.constant 0 : i32
    %c0_i32_0 = arith.constant 0 : i32
    %c0_i32_1 = arith.constant 0 : i32
    return %c0_i32, %c0_i32_0 : i32, i32
  }
  func.func @transform_4(%arg0: i32) -> (i32, i32) {
    %c0_i32 = arith.constant 0 : i32
    %c0_i32_0 = arith.constant 0 : i32
    %c0_i32_1 = arith.constant 0 : i32
    return %c0_i32, %c0_i32_0 : i32, i32
  }
  func.func @transform_5(%arg0: i32) -> (i32, i32) {
    %c0_i32 = arith.constant 0 : i32
    %c0_i32_0 = arith.constant 0 : i32
    return %arg0, %c0_i32 : i32, i32
  }
}

</mosaic_0001>

<llo_original>
// kernel: single_conv_neural_net.1
$region0: #{single_conv_neural_net.1}
  #allocation0 [shape = 'u32[]', space=smem, size = 0x4, offset = 0x4, fixed_abs, tag = 'smem constant byte address 0x4 - core index']
  #allocation1 [shape = 'u32[144,128]{1,0:T(1,128)}', space=vmem, size = 0x12000, scoped, tag = 'internal scratch']
  %s0 = inlined_call_operand.vmem [shape: f32[32,256], index: 0, kind: input, shape index: {}]
  %s1 = inlined_call_operand.vmem [shape: f32[256,256], index: 1, kind: input, shape index: {}]
  %s2 = inlined_call_operand.vmem [shape: f32[1,256], index: 2, kind: input, shape index: {}]
  %s3 = inlined_call_operand.vmem [shape: f32[256,128], index: 3, kind: input, shape index: {}]
  %s4 = inlined_call_operand.vmem [shape: f32[1,128], index: 4, kind: input, shape index: {}]
  %s5 = inlined_call_operand.vmem [shape: f32[32,128], index: 5, kind: output, shape index: {}]
  %s6 = sld [smem:[#allocation0]]
  $region30: #{single_conv_neural_net.1} parent=0
    _
  %s8 = ssub.s32 1, %s6
  %s9 = scalar_select 0, %s8, %s6
  // Predicated region
  $region2: #{single_conv_neural_net.1} parent=0 // pred_check
    _
  $region3: #{single_conv_neural_net.1} parent=0 // pred_check_branch
    %11 = sbr.rel (0) target = $region5
  $region4: #{single_conv_neural_net.1} parent=0 // pred_region
    _
  $region5: #{single_conv_neural_net.1} parent=0 // pred_fallthru
    _
  // Predicated region
  $region6: #{single_conv_neural_net.1} parent=0 // pred_check
    _
  $region7: #{single_conv_neural_net.1} parent=0 // pred_check_branch
    %13 = sbr.rel (0) target = $region9
  $region8: #{single_conv_neural_net.1} parent=0 // pred_region
    _
  $region9: #{single_conv_neural_net.1} parent=0 // pred_fallthru
    _
  // Predicated region
  $region10: #{single_conv_neural_net.1} parent=0 // pred_check
    _
  $region11: #{single_conv_neural_net.1} parent=0 // pred_check_branch
    %15 = sbr.rel (0) target = $region13
  $region12: #{single_conv_neural_net.1} parent=0 // pred_region
    _
  $region13: #{single_conv_neural_net.1} parent=0 // pred_fallthru
    _
  // Predicated region
  $region14: #{single_conv_neural_net.1} parent=0 // pred_check
    _
  $region15: #{single_conv_neural_net.1} parent=0 // pred_check_branch
    %17 = sbr.rel (0) target = $region17
  $region16: #{single_conv_neural_net.1} parent=0 // pred_region
    _
  $region17: #{single_conv_neural_net.1} parent=0 // pred_fallthru
    _
  // Predicated region
  $region18: #{single_conv_neural_net.1} parent=0 // pred_check
    _
  $region19: #{single_conv_neural_net.1} parent=0 // pred_check_branch
    %19 = sbr.rel (0) target = $region21
  $region20: #{single_conv_neural_net.1} parent=0 // pred_region
    _
  $region21: #{single_conv_neural_net.1} parent=0 // pred_fallthru
    _
  %v20 = vld [vmem:[%s0] sm:$0xff]
  %v21 = vld [vmem:[%s0 + $0x8] sm:$0xff]
  %v22 = vld [vmem:[%s0 + $0x10] sm:$0xff]
  %v23 = vld [vmem:[%s0 + $0x18] sm:$0xff]
  %v24 = vld [vmem:[%s0 + $0x20] sm:$0xff]
  %v25 = vld [vmem:[%s0 + $0x28] sm:$0xff]
  %v26 = vld [vmem:[%s0 + $0x30] sm:$0xff]
  %v27 = vld [vmem:[%s0 + $0x38] sm:$0xff]
  %v28 = vld [vmem:[%s1] sm:$0xff]
  %v29 = vld [vmem:[%s1 + $0x8] sm:$0xff]
  %v30 = vld [vmem:[%s1 + $0x10] sm:$0xff]
  %v31 = vld [vmem:[%s1 + $0x18] sm:$0xff]
  %v32 = vld [vmem:[%s1 + $0x20] sm:$0xff]
  %v33 = vld [vmem:[%s1 + $0x28] sm:$0xff]
  %v34 = vld [vmem:[%s1 + $0x30] sm:$0xff]
  %v35 = vld [vmem:[%s1 + $0x38] sm:$0xff]
  %v36 = vld [vmem:[%s1 + $0x40] sm:$0xff]
  %v37 = vld [vmem:[%s1 + $0x48] sm:$0xff]
  %v38 = vld [vmem:[%s1 + $0x50] sm:$0xff]
  %v39 = vld [vmem:[%s1 + $0x58] sm:$0xff]
  %v40 = vld [vmem:[%s1 + $0x60] sm:$0xff]
  %v41 = vld [vmem:[%s1 + $0x68] sm:$0xff]
  %v42 = vld [vmem:[%s1 + $0x70] sm:$0xff]
  %v43 = vld [vmem:[%s1 + $0x78] sm:$0xff]
  %v44 = vld [vmem:[%s1 + $0x80] sm:$0xff]
  %v45 = vld [vmem:[%s1 + $0x88] sm:$0xff]
  %v46 = vld [vmem:[%s1 + $0x90] sm:$0xff]
  %v47 = vld [vmem:[%s1 + $0x98] sm:$0xff]
  %v48 = vld [vmem:[%s1 + $0xa0] sm:$0xff]
  %v49 = vld [vmem:[%s1 + $0xa8] sm:$0xff]
  %v50 = vld [vmem:[%s1 + $0xb0] sm:$0xff]
  %v51 = vld [vmem:[%s1 + $0xb8] sm:$0xff]
  %v52 = vld [vmem:[%s1 + $0xc0] sm:$0xff]
  %v53 = vld [vmem:[%s1 + $0xc8] sm:$0xff]
  %v54 = vld [vmem:[%s1 + $0xd0] sm:$0xff]
  %v55 = vld [vmem:[%s1 + $0xd8] sm:$0xff]
  %v56 = vld [vmem:[%s1 + $0xe0] sm:$0xff]
  %v57 = vld [vmem:[%s1 + $0xe8] sm:$0xff]
  %v58 = vld [vmem:[%s1 + $0xf0] sm:$0xff]
  %v59 = vld [vmem:[%s1 + $0xf8] sm:$0xff]
  %v60 = vld [vmem:[%s1 + $0x100] sm:$0xff]
  %v61 = vld [vmem:[%s1 + $0x108] sm:$0xff]
  %v62 = vld [vmem:[%s1 + $0x110] sm:$0xff]
  %v63 = vld [vmem:[%s1 + $0x118] sm:$0xff]
  %v64 = vld [vmem:[%s1 + $0x120] sm:$0xff]
  %v65 = vld [vmem:[%s1 + $0x128] sm:$0xff]
  %v66 = vld [vmem:[%s1 + $0x130] sm:$0xff]
  %v67 = vld [vmem:[%s1 + $0x138] sm:$0xff]
  %v68 = vld [vmem:[%s1 + $0x140] sm:$0xff]
  %v69 = vld [vmem:[%s1 + $0x148] sm:$0xff]
  %v70 = vld [vmem:[%s1 + $0x150] sm:$0xff]
  %v71 = vld [vmem:[%s1 + $0x158] sm:$0xff]
  %v72 = vld [vmem:[%s1 + $0x160] sm:$0xff]
  %v73 = vld [vmem:[%s1 + $0x168] sm:$0xff]
  %v74 = vld [vmem:[%s1 + $0x170] sm:$0xff]
  %v75 = vld [vmem:[%s1 + $0x178] sm:$0xff]
  %v76 = vld [vmem:[%s1 + $0x180] sm:$0xff]
  %v77 = vld [vmem:[%s1 + $0x188] sm:$0xff]
  %v78 = vld [vmem:[%s1 + $0x190] sm:$0xff]
  %v79 = vld [vmem:[%s1 + $0x198] sm:$0xff]
  %v80 = vld [vmem:[%s1 + $0x1a0] sm:$0xff]
  %v81 = vld [vmem:[%s1 + $0x1a8] sm:$0xff]
  %v82 = vld [vmem:[%s1 + $0x1b0] sm:$0xff]
  %v83 = vld [vmem:[%s1 + $0x1b8] sm:$0xff]
  %v84 = vld [vmem:[%s1 + $0x1c0] sm:$0xff]
  %v85 = vld [vmem:[%s1 + $0x1c8] sm:$0xff]
  %v86 = vld [vmem:[%s1 + $0x1d0] sm:$0xff]
  %v87 = vld [vmem:[%s1 + $0x1d8] sm:$0xff]
  %v88 = vld [vmem:[%s1 + $0x1e0] sm:$0xff]
  %v89 = vld [vmem:[%s1 + $0x1e8] sm:$0xff]
  %v90 = vld [vmem:[%s1 + $0x1f0] sm:$0xff]
  %v91 = vld [vmem:[%s1 + $0x1f8] sm:$0xff]
  %v92 = vld [vmem:[%s2] sm:$0x3]
  %v94 = vlaneseq
  %v95 = vshrl.u32 %v94, 7
  %v96 = vsub.s32 0, %v95
  %v97 = vrot.slane %v92, %v96
  %v98 = vlaneseq
  %v99 = vshrl.u32 %v98, 7
  %v100 = vsub.s32 1, %v99
  %v101 = vrot.slane %v92, %v100
  %104 = vmatprep.subr.mxu0 %v29
  %105 = vmatpush1.msra.mxu0 %v28
  %106 = vmatprep.subr.mxu0 %v31
  %107 = vmatpush1.msra.mxu0 %v30
  %108 = vmatprep.subr.mxu0 %v33
  %109 = vmatpush1.msra.mxu0 %v32
  %110 = vmatprep.subr.mxu0 %v35
  %111 = vmatpush1.msra.mxu0 %v34
  %112 = vmatprep.subr.mxu0 %v37
  %113 = vmatpush1.msra.mxu0 %v36
  %114 = vmatprep.subr.mxu0 %v39
  %115 = vmatpush1.msra.mxu0 %v38
  %116 = vmatprep.subr.mxu0 %v41
  %117 = vmatpush1.msra.mxu0 %v40
  %118 = vmatprep.subr.mxu0 %v43
  %119 = vmatpush1.msra.mxu0 %v42
  %120 = vmatprep.subr.mxu0 %v45
  %121 = vmatpush1.msra.mxu0 %v44
  %122 = vmatprep.subr.mxu0 %v47
  %123 = vmatpush1.msra.mxu0 %v46
  %124 = vmatprep.subr.mxu0 %v49
  %125 = vmatpush1.msra.mxu0 %v48
  %126 = vmatprep.subr.mxu0 %v51
  %127 = vmatpush1.msra.mxu0 %v50
  %128 = vmatprep.subr.mxu0 %v53
  %129 = vmatpush1.msra.mxu0 %v52
  %130 = vmatprep.subr.mxu0 %v55
  %131 = vmatpush1.msra.mxu0 %v54
  %132 = vmatprep.subr.mxu0 %v57
  %133 = vmatpush1.msra.mxu0 %v56
  %134 = vmatprep.subr.mxu0 %v59
  %135 = vmatpush1.msra.mxu0 %v58
  %136 = vmatprep.subr.mxu0 %v61
  %137 = vmatpush1.msra.mxu0 %v60
  %138 = vmatprep.subr.mxu0 %v63
  %139 = vmatpush1.msra.mxu0 %v62
  %140 = vmatprep.subr.mxu0 %v65
  %141 = vmatpush1.msra.mxu0 %v64
  %142 = vmatprep.subr.mxu0 %v67
  %143 = vmatpush1.msra.mxu0 %v66
  %144 = vmatprep.subr.mxu0 %v69
  %145 = vmatpush1.msra.mxu0 %v68
  %146 = vmatprep.subr.mxu0 %v71
  %147 = vmatpush1.msra.mxu0 %v70
  %148 = vmatprep.subr.mxu0 %v73
  %149 = vmatpush1.msra.mxu0 %v72
  %150 = vmatprep.subr.mxu0 %v75
  %151 = vmatpush1.msra.mxu0 %v74
  %152 = vmatprep.subr.mxu0 %v77
  %153 = vmatpush1.msra.mxu0 %v76
  %154 = vmatprep.subr.mxu0 %v79
  %155 = vmatpush1.msra.mxu0 %v78
  %156 = vmatprep.subr.mxu0 %v81
  %157 = vmatpush1.msra.mxu0 %v80
  %158 = vmatprep.subr.mxu0 %v83
  %159 = vmatpush1.msra.mxu0 %v82
  %160 = vmatprep.subr.mxu0 %v85
  %161 = vmatpush1.msra.mxu0 %v84
  %162 = vmatprep.subr.mxu0 %v87
  %163 = vmatpush1.msra.mxu0 %v86
  %164 = vmatprep.subr.mxu0 %v89
  %165 = vmatpush1.msra.mxu0 %v88
  %166 = vmatprep.subr.mxu0 %v91
  %167 = vmatpush1.msra.mxu0 %v90
  %168 = vmatprep.mubr.f32.mxu0 %v21
  %169 = vmatmul.mubr.f32.gmra.mrb[0].mxu0 %v20
  %v170 = vpop.f32.mrb[0].mxu0
  %v171 = vadd.f32 %v97, %v170
  %v172 = vpop.f32.mrb[0].mxu0
  %v173 = vadd.f32 %v101, %v172
  %174 = vmatprep.mubr.f32.mxu0 %v23
  %175 = vmatmul.mubr.f32.gmra.mrb[0].mxu0 %v22
  %v176 = vpop.f32.mrb[0].mxu0
  %v177 = vadd.f32 %v97, %v176
  %v178 = vpop.f32.mrb[0].mxu0
  %v179 = vadd.f32 %v101, %v178
  %180 = vmatprep.mubr.f32.mxu0 %v25
  %181 = vmatmul.mubr.f32.gmra.mrb[0].mxu0 %v24
  %v182 = vpop.f32.mrb[0].mxu0
  %v183 = vadd.f32 %v97, %v182
  %v184 = vpop.f32.mrb[0].mxu0
  %v185 = vadd.f32 %v101, %v184
  %186 = vmatprep.mubr.f32.mxu0 %v27
  %187 = vmatmul.mubr.f32.gmra.mrb[0].mxu0 %v26
  %v188 = vpop.f32.mrb[0].mxu0
  %v189 = vadd.f32 %v97, %v188
  %v190 = vpop.f32.mrb[0].mxu0
  %v191 = vadd.f32 %v101, %v190
  %192 = vdwg.mxu0
  %v193 = vmax.f32 %v171, 0.0
  %v194 = vmax.f32 %v173, 0.0
  %v195 = vmax.f32 %v177, 0.0
  %v196 = vmax.f32 %v179, 0.0
  %v197 = vmax.f32 %v183, 0.0
  %v198 = vmax.f32 %v185, 0.0
  %v199 = vmax.f32 %v189, 0.0
  %v200 = vmax.f32 %v191, 0.0
  %v201 = vld [vmem:[%s3] sm:$0xff]
  %v202 = vld [vmem:[%s3 + $0x8] sm:$0xff]
  %v203 = vld [vmem:[%s3 + $0x10] sm:$0xff]
  %v204 = vld [vmem:[%s3 + $0x18] sm:$0xff]
  %v205 = vld [vmem:[%s3 + $0x20] sm:$0xff]
  %v206 = vld [vmem:[%s3 + $0x28] sm:$0xff]
  %v207 = vld [vmem:[%s3 + $0x30] sm:$0xff]
  %v208 = vld [vmem:[%s3 + $0x38] sm:$0xff]
  %v209 = vld [vmem:[%s3 + $0x40] sm:$0xff]
  %v210 = vld [vmem:[%s3 + $0x48] sm:$0xff]
  %v211 = vld [vmem:[%s3 + $0x50] sm:$0xff]
  %v212 = vld [vmem:[%s3 + $0x58] sm:$0xff]
  %v213 = vld [vmem:[%s3 + $0x60] sm:$0xff]
  %v214 = vld [vmem:[%s3 + $0x68] sm:$0xff]
  %v215 = vld [vmem:[%s3 + $0x70] sm:$0xff]
  %v216 = vld [vmem:[%s3 + $0x78] sm:$0xff]
  %v217 = vld [vmem:[%s3 + $0x80] sm:$0xff]
  %v218 = vld [vmem:[%s3 + $0x88] sm:$0xff]
  %v219 = vld [vmem:[%s3 + $0x90] sm:$0xff]
  %v220 = vld [vmem:[%s3 + $0x98] sm:$0xff]
  %v221 = vld [vmem:[%s3 + $0xa0] sm:$0xff]
  %v222 = vld [vmem:[%s3 + $0xa8] sm:$0xff]
  %v223 = vld [vmem:[%s3 + $0xb0] sm:$0xff]
  %v224 = vld [vmem:[%s3 + $0xb8] sm:$0xff]
  %v225 = vld [vmem:[%s3 + $0xc0] sm:$0xff]
  %v226 = vld [vmem:[%s3 + $0xc8] sm:$0xff]
  %v227 = vld [vmem:[%s3 + $0xd0] sm:$0xff]
  %v228 = vld [vmem:[%s3 + $0xd8] sm:$0xff]
  %v229 = vld [vmem:[%s3 + $0xe0] sm:$0xff]
  %v230 = vld [vmem:[%s3 + $0xe8] sm:$0xff]
  %v231 = vld [vmem:[%s3 + $0xf0] sm:$0xff]
  %v232 = vld [vmem:[%s3 + $0xf8] sm:$0xff]
  %v233 = vld [vmem:[%s4] sm:$0x1]
  %v235 = vlaneseq
  %v236 = vshrl.u32 %v235, 7
  %v237 = vsub.s32 0, %v236
  %v238 = vrot.slane %v233, %v237
  %240 = vmatprep.subr.mxu0 0.0
  %241 = vmatpush1.msra.mxu0 %v201
  %242 = vmatprep.subr.mxu0 0.0
  %243 = vmatpush1.msra.mxu0 %v202
  %244 = vmatprep.subr.mxu0 0.0
  %245 = vmatpush1.msra.mxu0 %v203
  %246 = vmatprep.subr.mxu0 0.0
  %247 = vmatpush1.msra.mxu0 %v204
  %248 = vmatprep.subr.mxu0 0.0
  %249 = vmatpush1.msra.mxu0 %v205
  %250 = vmatprep.subr.mxu0 0.0
  %251 = vmatpush1.msra.mxu0 %v206
  %252 = vmatprep.subr.mxu0 0.0
  %253 = vmatpush1.msra.mxu0 %v207
  %254 = vmatprep.subr.mxu0 0.0
  %255 = vmatpush1.msra.mxu0 %v208
  %256 = vmatprep.subr.mxu0 0.0
  %257 = vmatpush1.msra.mxu0 %v209
  %258 = vmatprep.subr.mxu0 0.0
  %259 = vmatpush1.msra.mxu0 %v210
  %260 = vmatprep.subr.mxu0 0.0
  %261 = vmatpush1.msra.mxu0 %v211
  %262 = vmatprep.subr.mxu0 0.0
  %263 = vmatpush1.msra.mxu0 %v212
  %264 = vmatprep.subr.mxu0 0.0
  %265 = vmatpush1.msra.mxu0 %v213
  %266 = vmatprep.subr.mxu0 0.0
  %267 = vmatpush1.msra.mxu0 %v214
  %268 = vmatprep.subr.mxu0 0.0
  %269 = vmatpush1.msra.mxu0 %v215
  %270 = vmatprep.subr.mxu0 0.0
  %271 = vmatpush1.msra.mxu0 %v216
  %272 = vmatprep.subr.mxu0 0.0
  %273 = vmatpush1.msra.mxu0 %v217
  %274 = vmatprep.subr.mxu0 0.0
  %275 = vmatpush1.msra.mxu0 %v218
  %276 = vmatprep.subr.mxu0 0.0
  %277 = vmatpush1.msra.mxu0 %v219
  %278 = vmatprep.subr.mxu0 0.0
  %279 = vmatpush1.msra.mxu0 %v220
  %280 = vmatprep.subr.mxu0 0.0
  %281 = vmatpush1.msra.mxu0 %v221
  %282 = vmatprep.subr.mxu0 0.0
  %283 = vmatpush1.msra.mxu0 %v222
  %284 = vmatprep.subr.mxu0 0.0
  %285 = vmatpush1.msra.mxu0 %v223
  %286 = vmatprep.subr.mxu0 0.0
  %287 = vmatpush1.msra.mxu0 %v224
  %288 = vmatprep.subr.mxu0 0.0
  %289 = vmatpush1.msra.mxu0 %v225
  %290 = vmatprep.subr.mxu0 0.0
  %291 = vmatpush1.msra.mxu0 %v226
  %292 = vmatprep.subr.mxu0 0.0
  %293 = vmatpush1.msra.mxu0 %v227
  %294 = vmatprep.subr.mxu0 0.0
  %295 = vmatpush1.msra.mxu0 %v228
  %296 = vmatprep.subr.mxu0 0.0
  %297 = vmatpush1.msra.mxu0 %v229
  %298 = vmatprep.subr.mxu0 0.0
  %299 = vmatpush1.msra.mxu0 %v230
  %300 = vmatprep.subr.mxu0 0.0
  %301 = vmatpush1.msra.mxu0 %v231
  %302 = vmatprep.subr.mxu0 0.0
  %303 = vmatpush1.msra.mxu0 %v232
  %304 = vmatprep.mubr.f32.mxu0 %v194
  %305 = vmatmul.mubr.f32.gmra.mrb[0].mxu0 %v193
  %v306 = vpop.f32.mrb[0].mxu0
  %v307 = vadd.f32 %v238, %v306
  %v308 = vpop.f32.mrb[0].mxu0
  %309 = vmatprep.mubr.f32.mxu0 %v196
  %310 = vmatmul.mubr.f32.gmra.mrb[0].mxu0 %v195
  %v311 = vpop.f32.mrb[0].mxu0
  %v312 = vadd.f32 %v238, %v311
  %v313 = vpop.f32.mrb[0].mxu0
  %314 = vmatprep.mubr.f32.mxu0 %v198
  %315 = vmatmul.mubr.f32.gmra.mrb[0].mxu0 %v197
  %v316 = vpop.f32.mrb[0].mxu0
  %v317 = vadd.f32 %v238, %v316
  %v318 = vpop.f32.mrb[0].mxu0
  %319 = vmatprep.mubr.f32.mxu0 %v200
  %320 = vmatmul.mubr.f32.gmra.mrb[0].mxu0 %v199
  %v321 = vpop.f32.mrb[0].mxu0
  %v322 = vadd.f32 %v238, %v321
  %v323 = vpop.f32.mrb[0].mxu0
  %324 = vdwg.mxu0
  %325 = vst [vmem:[%s5] sm:$0xff] %v307
  %326 = vst [vmem:[%s5 + $0x8] sm:$0xff] %v312
  %327 = vst [vmem:[%s5 + $0x10] sm:$0xff] %v317
  %328 = vst [vmem:[%s5 + $0x18] sm:$0xff] %v322
  // Predicated region
  $region22: #{single_conv_neural_net.1} parent=0 // pred_check
    _
  $region23: #{single_conv_neural_net.1} parent=0 // pred_check_branch
    %330 = sbr.rel (0) target = $region25
  $region24: #{single_conv_neural_net.1} parent=0 // pred_region
    _
  $region25: #{single_conv_neural_net.1} parent=0 // pred_fallthru
    _
  // Predicated region
  $region26: #{single_conv_neural_net.1} parent=0 // pred_check
    _
  $region27: #{single_conv_neural_net.1} parent=0 // pred_check_branch
    %332 = sbr.rel (0) target = $region29
  $region28: #{single_conv_neural_net.1} parent=0 // pred_region
    _
  $region29: #{single_conv_neural_net.1} parent=0 // pred_fallthru
    _

</llo_original>
